<compile_context>
chip_gen: v5e
topology: v5e:2x2
jax: 0.10.0
libtpu: 0.0.40
codegen_flags: <defaults>
</compile_context>

<pallas_src>
import functools

import jax
import jax.numpy as jnp
import numpy as np
from jax import lax
from jax.experimental import pallas as pl
from jax.experimental.pallas import tpu as pltpu

# MXU operand dtype for the two projection matmuls (f32 accumulation kept).
MXU_DTYPE = jnp.bfloat16


# ----------------------------------------------------------------------------
# Kernel 1: tiled (M,K) @ (K,N) [+ bias(1,N)] — to_qkv (no bias) and to_out
# ----------------------------------------------------------------------------
def _matmul_kernel(x_ref, w_ref, o_ref, acc_ref, *, mxu_dtype):
    @pl.when(pl.program_id(2) == 0)
    def _():
        acc_ref[...] = jnp.zeros_like(acc_ref)

    acc_ref[...] += jnp.dot(x_ref[...].astype(mxu_dtype),
                            w_ref[...].astype(mxu_dtype),
                            preferred_element_type=jnp.float32)

    @pl.when(pl.program_id(2) == pl.num_programs(2) - 1)
    def _():
        o_ref[...] = acc_ref[...].astype(o_ref.dtype)


def _matmul_bias_kernel(x_ref, w_ref, b_ref, o_ref, acc_ref, *, mxu_dtype):
    @pl.when(pl.program_id(2) == 0)
    def _():
        acc_ref[...] = jnp.zeros_like(acc_ref)

    acc_ref[...] += jnp.dot(x_ref[...].astype(mxu_dtype),
                            w_ref[...].astype(mxu_dtype),
                            preferred_element_type=jnp.float32)

    @pl.when(pl.program_id(2) == pl.num_programs(2) - 1)
    def _():
        o_ref[...] = (acc_ref[...] + b_ref[...].astype(jnp.float32)).astype(o_ref.dtype)


def _pick_tile(full, target, align):
    """Largest `align`-aligned tile <= target that divides `full`; falls back to
    the full extent (always legal: block == full array dim)."""
    if full <= target:
        return full
    t = (target // align) * align
    while t >= align:
        if full % t == 0:
            return t
        t -= align
    return full


def matmul(x, w, b=None, *, tm_target=512, tn_target=512, tk_target=512,
           mxu_dtype=MXU_DTYPE):
    M, K = x.shape
    K2, N = w.shape
    assert K == K2
    # tm aligned to 16 for bf16 sublane packing; tn/tk to 128 (lane width / MXU).
    tm = _pick_tile(M, tm_target, 16)
    tn = _pick_tile(N, tn_target, 128)
    tk = _pick_tile(K, tk_target, 128)
    grid = (M // tm, N // tn, K // tk)

    x_spec = pl.BlockSpec((tm, tk), lambda i, j, k: (i, k))
    w_spec = pl.BlockSpec((tk, tn), lambda i, j, k: (k, j))
    o_spec = pl.BlockSpec((tm, tn), lambda i, j, k: (i, j))

    cost = pl.CostEstimate(
        flops=2 * M * N * K,
        transcendentals=0,
        bytes_accessed=(M * K + K * N + M * N) * x.dtype.itemsize,
    )
    cparams = pltpu.CompilerParams(
        dimension_semantics=("parallel", "parallel", "arbitrary"),
        # 48 MiB: big enough for 512-class double-buffered tiles, still below
        # the v7x 64 MiB physical VMEM (do NOT copy a v6e 96 MiB setting).
        vmem_limit_bytes=48 * 1024 * 1024,
    )
    scratch = [pltpu.VMEM((tm, tn), jnp.float32)]

    if b is None:
        kernel = functools.partial(_matmul_kernel, mxu_dtype=mxu_dtype)
        return pl.pallas_call(
            kernel,
            out_shape=jax.ShapeDtypeStruct((M, N), x.dtype),
            grid=grid,
            in_specs=[x_spec, w_spec],
            out_specs=o_spec,
            scratch_shapes=scratch,
            compiler_params=cparams,
            cost_estimate=cost,
        )(x, w)

    b2 = b.reshape(1, N).astype(jnp.float32)
    b_spec = pl.BlockSpec((1, tn), lambda i, j, k: (0, j))
    kernel = functools.partial(_matmul_bias_kernel, mxu_dtype=mxu_dtype)
    return pl.pallas_call(
        kernel,
        out_shape=jax.ShapeDtypeStruct((M, N), x.dtype),
        grid=grid,
        in_specs=[x_spec, w_spec, b_spec],
        out_specs=o_spec,
        scratch_shapes=scratch,
        compiler_params=cparams,
        cost_estimate=cost,
    )(x, w, b2)


# ----------------------------------------------------------------------------
# Kernel 2: fused attention core.  One grid step processes B_BLK batch elements
# (all heads at once, lane-dense).  Per-head LayerNorm statistics are computed
# with MXU dots against a block-diagonal pooling matrix; scores/out are full
# (inner x inner)/(seq x inner) lane-dense dots with a block-diagonal mask.
# ----------------------------------------------------------------------------
def _g_attention_core_kernel(qkv_ref, par_ref, bd_ref, o_ref, *,
                             b_blk, seq_len, dim_head, inner, eps):
    x = qkv_ref[...].astype(jnp.float32)         # (b_blk*seq, 3*inner)
    par = par_ref[...]                           # (4, inner) f32
    mask = bd_ref[...]                           # (inner, inner) 0/1 block-diag, f32
    pool = mask * (1.0 / float(dim_head))        # segmented-mean pooling matrix

    gk = par[0:1, :]                             # carries the 1/seq_len factor
    bk = par[1:2, :]                             # carries the 1/seq_len factor
    gv = par[2:3, :]
    bv = par[3:4, :]

    q = x[:, :inner]
    k = x[:, inner:2 * inner]
    v = x[:, 2 * inner:]

    def head_layernorm(t, gamma, beta):
        # Per-head mean and (two-pass, biased) variance over the dim_head
        # columns of every head at once: one MXU dot against `pool` both
        # reduces within each head and broadcasts the statistic back to every
        # column of that head.  All math in f32 (no bf16 VPU on v5e).
        mu = jnp.dot(t, pool, preferred_element_type=jnp.float32)
        c = t - mu
        var = jnp.dot(c * c, pool, preferred_element_type=jnp.float32)
        return c * lax.rsqrt(var + eps) * gamma + beta

    kn = head_layernorm(k, gk, bk)               # already scaled by 1/seq_len
    vn = head_layernorm(v, gv, bv)

    # seq contraction must not mix batch elements: short static loop over the
    # batch elements inside this block; temporaries die each iteration.
    for b in range(b_blk):
        r0 = b * seq_len
        kb = kn[r0:r0 + seq_len, :]
        vb = vn[r0:r0 + seq_len, :]
        qb = q[r0:r0 + seq_len, :]
        # All-head scores in one lane-dense dot, contracting the seq axis of
        # both operands (one transpose of the full lane-aligned slab).
        scores = lax.dot_general(kb, vb, (((0,), (0,)), ((), ())),
                                 preferred_element_type=jnp.float32)
        scores = scores * mask                   # keep per-head diagonal blocks
        out_b = jnp.dot(qb, scores, preferred_element_type=jnp.float32)
        # Lane-dense store: full inner width, one unmasked store per element.
        o_ref[r0:r0 + seq_len, :] = out_b.astype(o_ref.dtype)


def _pick_batch_block(batch, seq_len, inner, itemsize=4, target_bytes=1 << 20):
    """Largest divisor of `batch` whose qkv block stays under target_bytes,
    keeping the row count sublane-legal (multiple of 8 or full extent)."""
    if seq_len % 8 != 0:
        return batch                              # full rows are always legal
    best = 1
    for d in range(1, batch + 1):
        if batch % d == 0 and d * seq_len * 3 * inner * itemsize <= target_bytes:
            best = d
    return best


def g_attention_core(qkv, gamma_k, beta_k, gamma_v, beta_v, *, batch, seq_len,
                     heads, dim_head, eps):
    inner = heads * dim_head
    BN, C = qkv.shape
    assert BN == batch * seq_len and C == 3 * inner

    # Fold the 1/seq_len score scaling into the k-LayerNorm affine parameters,
    # keeping everything in f32 (no pre-scaling precision loss).
    par4 = jnp.concatenate(
        [(gamma_k / seq_len).reshape(1, inner),
         (beta_k / seq_len).reshape(1, inner),
         gamma_v.reshape(1, inner),
         beta_v.reshape(1, inner)], axis=0).astype(jnp.float32)

    # Block-diagonal 0/1 head mask (inner, inner), built once on the host.
    bd_mask = jnp.asarray(
        np.kron(np.eye(heads, dtype=np.float32),
                np.ones((dim_head, dim_head), np.float32)))

    b_blk = _pick_batch_block(batch, seq_len, inner, qkv.dtype.itemsize)
    rows = b_blk * seq_len
    grid = (batch // b_blk,)

    qkv_spec = pl.BlockSpec((rows, 3 * inner), lambda b: (b, 0))
    par_spec = pl.BlockSpec((4, inner), lambda b: (0, 0))
    bd_spec = pl.BlockSpec((inner, inner), lambda b: (0, 0))
    out_spec = pl.BlockSpec((rows, inner), lambda b: (b, 0))

    kernel = functools.partial(_g_attention_core_kernel,
                               b_blk=b_blk, seq_len=seq_len,
                               dim_head=dim_head, inner=inner, eps=eps)

    cost = pl.CostEstimate(
        flops=12 * batch * seq_len * inner * inner,
        transcendentals=2 * batch * seq_len * inner,
        bytes_accessed=(BN * C + BN * inner) * qkv.dtype.itemsize
        + (4 * inner + inner * inner) * 4,
    )
    return pl.pallas_call(
        kernel,
        out_shape=jax.ShapeDtypeStruct((BN, inner), qkv.dtype),
        grid=grid,
        in_specs=[qkv_spec, par_spec, bd_spec],
        out_specs=out_spec,
        compiler_params=pltpu.CompilerParams(
            dimension_semantics=("parallel",),
            vmem_limit_bytes=32 * 1024 * 1024,
        ),
        cost_estimate=cost,
    )(qkv, par4, bd_mask)


# ----------------------------------------------------------------------------
# Full module forward — no reshapes/transposes between the Pallas calls
# ----------------------------------------------------------------------------
def g_attention_forward(x, params, heads, dim_head, eps=1e-5):
    B, N, dim = x.shape
    x2 = x.reshape(B * N, dim)

    qkv = matmul(x2, params["w_qkv"])                        # (B*N, 3*inner), no bias
    out = g_attention_core(qkv,
                           params["gamma_k"], params["beta_k"],
                           params["gamma_v"], params["beta_v"],
                           batch=B, seq_len=N, heads=heads,
                           dim_head=dim_head, eps=eps)       # (B*N, inner)
    y = matmul(out, params["w_out"], params["b_out"])        # (B*N, dim)
    return y.reshape(B, N, dim)   # Dropout(p=0.0) is identity


# ----------------------------------------------------------------------------
# Pure-JAX f32 reference (for correctness check)
# ----------------------------------------------------------------------------
def g_attention_ref(x, params, heads, dim_head, eps=1e-5):
    B, N, dim = x.shape
    inner = heads * dim_head
    qkv = x @ params["w_qkv"]
    q, k, v = jnp.split(qkv, 3, axis=-1)

    def rearr(t):
        return t.reshape(B, N, heads, dim_head).transpose(0, 2, 1, 3)

    q, k, v = rearr(q), rearr(k), rearr(v)

    def ln(t, g, b):
        mu = t.mean(-1, keepdims=True)
        var = ((t - mu) ** 2).mean(-1, keepdims=True)
        return (t - mu) / jnp.sqrt(var + eps) * g[None, :, None, :] + b[None, :, None, :]

    k = ln(k, params["gamma_k"], params["beta_k"])
    v = ln(v, params["gamma_v"], params["beta_v"])
    scores = jnp.einsum("bhnd,bhne->bhde", k, v) / N
    out = jnp.einsum("bhnd,bhde->bhne", q, scores)
    out = out.transpose(0, 2, 1, 3).reshape(B, N, inner)
    return out @ params["w_out"] + params["b_out"]


if __name__ == "__main__":
    # Small shapes consistent with the module (project_out path is active).
    B, N, dim = 2, 8, 32
    heads, dim_head = 4, 16
    inner = heads * dim_head

    key = jax.random.PRNGKey(0)
    k0, k1, k2, k3, k4, k5, k6, k7 = jax.random.split(key, 8)

    # Deterministic synthetic parameters (weights stored as the math matrices,
    # i.e. the transpose of the torch nn.Linear .weight layout).
    params = {
        "w_qkv": 0.05 * jax.random.normal(k1, (dim, 3 * inner), jnp.float32),
        "gamma_k": 1.0 + 0.1 * jax.random.normal(k2, (heads, dim_head), jnp.float32),
        "beta_k": 0.1 * jax.random.normal(k3, (heads, dim_head), jnp.float32),
        "gamma_v": 1.0 + 0.1 * jax.random.normal(k4, (heads, dim_head), jnp.float32),
        "beta_v": 0.1 * jax.random.normal(k5, (heads, dim_head), jnp.float32),
        "w_out": 0.05 * jax.random.normal(k6, (inner, dim), jnp.float32),
        "b_out": 0.02 * jax.random.normal(k7, (dim,), jnp.float32),
    }
    x = jax.random.normal(k0, (B, N, dim), jnp.float32)

    y = g_attention_forward(x, params, heads, dim_head)
    y = jax.block_until_ready(y)

    # bf16 MXU operands in the two projection matmuls -> compare against the
    # f32 reference with a correspondingly relaxed tolerance (core math is f32).
    y_ref = g_attention_ref(x, params, heads, dim_head)
    np.testing.assert_allclose(np.asarray(y), np.asarray(y_ref),
                               rtol=3e-2, atol=1e-2)

    print("KERNEL_OK")
</pallas_src>

<mosaic_0001>
module attributes {stable_mosaic.version = 11 : i64} {
  func.func @_matmul_kernel(%arg0: i32, %arg1: i32, %arg2: i32, %arg3: memref<16x32xf32, #tpu.memory_space<vmem>>, %arg4: memref<32x192xf32, #tpu.memory_space<vmem>>, %arg5: memref<16x192xf32, #tpu.memory_space<vmem>>, %arg6: memref<16x192xf32, #tpu.memory_space<vmem>>) attributes {dimension_semantics = [#tpu.dimension_semantics<parallel>, #tpu.dimension_semantics<parallel>, #tpu.dimension_semantics<arbitrary>], iteration_bounds = array<i64: 1, 1, 1>, scalar_prefetch = 0 : i64, scratch_operands = 1 : i64, tpu.core_type = #tpu.core_type<tc>, window_params = [{transform_indices = @transform_0, window_bounds = array<i64: 16, 32>}, {transform_indices = @transform_1, window_bounds = array<i64: 32, 192>}, {transform_indices = @transform_2, window_bounds = array<i64: 16, 192>}]} {
    %c0_i32 = arith.constant 0 : i32
    %0 = arith.cmpi eq, %arg2, %c0_i32 : i32
    %1 = arith.extui %0 : i1 to i32
    %c0_i32_0 = arith.constant 0 : i32
    %2 = arith.cmpi ne, %1, %c0_i32_0 : i32
    scf.if %2 {
      %cst_10 = arith.constant 0.000000e+00 : f32
      %14 = vector.broadcast %cst_10 : f32 to vector<16x192xf32>
      %c0_11 = arith.constant 0 : index
      %c0_12 = arith.constant 0 : index
      %15 = vector.load %arg6[%c0_11, %c0_12] : memref<16x192xf32, #tpu.memory_space<vmem>>, vector<16x192xf32>
      tpu.vector_store %arg6[%c0_11, %c0_12], %14 {strides = array<i32>} : memref<16x192xf32, #tpu.memory_space<vmem>>, vector<16x192xf32>,
    } else {
    }
    %c0 = arith.constant 0 : index
    %c0_1 = arith.constant 0 : index
    %3 = vector.load %arg6[%c0, %c0_1] : memref<16x192xf32, #tpu.memory_space<vmem>>, vector<16x192xf32>
    %c0_2 = arith.constant 0 : index
    %c0_3 = arith.constant 0 : index
    %4 = vector.load %arg3[%c0_2, %c0_3] : memref<16x32xf32, #tpu.memory_space<vmem>>, vector<16x32xf32>
    %5 = arith.truncf %4 : vector<16x32xf32> to vector<16x32xbf16>
    %c0_4 = arith.constant 0 : index
    %c0_5 = arith.constant 0 : index
    %6 = vector.load %arg4[%c0_4, %c0_5] : memref<32x192xf32, #tpu.memory_space<vmem>>, vector<32x192xf32>
    %7 = arith.truncf %6 : vector<32x192xf32> to vector<32x192xbf16>
    %cst = arith.constant dense<0.000000e+00> : vector<16x192xf32>
    %8 = tpu.matmul %5, %7, %cst {dimension_numbers = #tpu.dot_dimension_numbers<[1], [0], [0], [1], [0, 0, 1, 1], [], []>} : vector<16x32xbf16>, vector<32x192xbf16>, vector<16x192xf32> -> vector<16x192xf32>
    %9 = arith.addf %3, %8 : vector<16x192xf32>
    %c0_6 = arith.constant 0 : index
    %c0_7 = arith.constant 0 : index
    %10 = vector.load %arg6[%c0_6, %c0_7] : memref<16x192xf32, #tpu.memory_space<vmem>>, vector<16x192xf32>
    tpu.vector_store %arg6[%c0_6, %c0_7], %9 {strides = array<i32>} : memref<16x192xf32, #tpu.memory_space<vmem>>, vector<16x192xf32>,
    %c0_i32_8 = arith.constant 0 : i32
    %11 = arith.cmpi eq, %arg2, %c0_i32_8 : i32
    %12 = arith.extui %11 : i1 to i32
    %c0_i32_9 = arith.constant 0 : i32
    %13 = arith.cmpi ne, %12, %c0_i32_9 : i32
    scf.if %13 {
      %c0_10 = arith.constant 0 : index
      %c0_11 = arith.constant 0 : index
      %14 = vector.load %arg6[%c0_10, %c0_11] : memref<16x192xf32, #tpu.memory_space<vmem>>, vector<16x192xf32>
      %c0_12 = arith.constant 0 : index
      %c0_13 = arith.constant 0 : index
      %15 = vector.load %arg5[%c0_12, %c0_13] : memref<16x192xf32, #tpu.memory_space<vmem>>, vector<16x192xf32>
      tpu.vector_store %arg5[%c0_12, %c0_13], %14 {strides = array<i32>} : memref<16x192xf32, #tpu.memory_space<vmem>>, vector<16x192xf32>,
    } else {
    }
    return
  }
  func.func @transform_0(%arg0: i32, %arg1: i32, %arg2: i32) -> (i32, i32) {
    %c0_i32 = arith.constant 0 : i32
    return %arg0, %arg2 : i32, i32
  }
  func.func @transform_1(%arg0: i32, %arg1: i32, %arg2: i32) -> (i32, i32) {
    %c0_i32 = arith.constant 0 : i32
    return %arg2, %arg1 : i32, i32
  }
  func.func @transform_2(%arg0: i32, %arg1: i32, %arg2: i32) -> (i32, i32) {
    %c0_i32 = arith.constant 0 : i32
    return %arg0, %arg1 : i32, i32
  }
}

</mosaic_0001>

<llo_original>
// kernel: tpu_custom_call.1
$region0: #{tpu_custom_call.1}
  #allocation0 [shape = 'u32[]', space=smem, size = 0x4, offset = 0x4, fixed_abs, tag = 'smem constant byte address 0x4 - core index']
  #allocation1 [shape = 'u32[72,128]{1,0:T(1,128)}', space=vmem, size = 0x9000, scoped, tag = 'internal scratch']
  #allocation2 [shape = 'f32[16,192]{1,0:T(8,128)}', space=vmem, size = 0x4000, scoped, tag = 'scratch operand']
  %s0 = inlined_call_operand.hbm [shape: f32[16,32], index: 0, kind: input, shape index: {}]
  %s1 = inlined_call_operand.hbm [shape: f32[32,192], index: 1, kind: input, shape index: {}]
  %s2 = inlined_call_operand.hbm [shape: f32[16,192], index: 2, kind: output, shape index: {}]
  %s3 = sld [smem:[#allocation0]]
  $region34: #{tpu_custom_call.1} parent=0
    _
  %s5 = ssub.s32 1, %s3
  %s6 = scalar_select 0, %s5, %s3
  $region1: #{tpu_custom_call.1} parent=0
    #allocation3 [shape = 'u8[8192]{0}', space=vmem, size = 0x2000, scoped, tag = 'input window, operand 0, single buffered']
    #allocation4 [shape = 's32[1]{0}', space=sflag, size = 0x4, scoped, tag = 'scoped memory for tpu_custom_call.1']
    #allocation5 [shape = 's32[1]{0}', space=sflag, size = 0x4, scoped, tag = 'scoped memory for tpu_custom_call.1']
    #allocation6 [shape = 'u8[32768]{0}', space=vmem, size = 0x8000, scoped, tag = 'input window, operand 1, single buffered']
    #allocation7 [shape = 's32[1]{0}', space=sflag, size = 0x4, scoped, tag = 'scoped memory for tpu_custom_call.1']
    #allocation8 [shape = 'u8[16384]{0}', space=vmem, size = 0x4000, scoped, tag = 'output window, operand 0, single buffered']
    %7 = vsyncpa [#allocation4], 0
    %8 = vsyncpa [#allocation7], 0
    %9 = vsyncpa [#allocation5], 0
    // Predicated region
    $region2: #{tpu_custom_call.1} parent=1 // pred_check
      _
    $region3: #{tpu_custom_call.1} parent=1 // pred_check_branch
      %11 = sbr.rel (0) target = $region5
    $region4: #{tpu_custom_call.1} parent=1 // pred_region
      %13 = vsyncadd [#allocation4], 0
      %s14 = sshll.u32 %s0, 4
      %s15 = int_to_ptr.hbm [resolvable:$true] %s14
      %s16 = sshll.u32 [#allocation3], 4
      %s17 = int_to_ptr.vmem [resolvable:$true] %s16
      %22 = dma.hbm_to_vmem [thread:$0]  %s15, 256, %s17, [#allocation4], 128, 128, 8
    $region5: #{tpu_custom_call.1} parent=1 // pred_fallthru
      _
    // Predicated region
    $region6: #{tpu_custom_call.1} parent=1 // pred_check
      _
    $region7: #{tpu_custom_call.1} parent=1 // pred_check_branch
      %24 = sbr.rel (0) target = $region9
    $region8: #{tpu_custom_call.1} parent=1 // pred_region
      %26 = vsyncadd [#allocation7], 0
      %s27 = sshll.u32 %s1, 4
      %s28 = int_to_ptr.hbm [resolvable:$true] %s27
      %s29 = sshll.u32 [#allocation6], 4
      %s30 = int_to_ptr.vmem [resolvable:$true] %s29
      %35 = dma.hbm_to_vmem [thread:$0]  %s28, 1024, %s30, [#allocation7], 256, 256, 16
    $region9: #{tpu_custom_call.1} parent=1 // pred_fallthru
      _
    // Predicated region
    $region10: #{tpu_custom_call.1} parent=1 // pred_check
      _
    $region11: #{tpu_custom_call.1} parent=1 // pred_check_branch
      %37 = sbr.rel (0) target = $region13
    $region12: #{tpu_custom_call.1} parent=1 // pred_region
      %39 = dma.done [#allocation4], 256
    $region13: #{tpu_custom_call.1} parent=1 // pred_fallthru
      _
    // Predicated region
    $region14: #{tpu_custom_call.1} parent=1 // pred_check
      _
    $region15: #{tpu_custom_call.1} parent=1 // pred_check_branch
      %41 = sbr.rel (0) target = $region17
    $region16: #{tpu_custom_call.1} parent=1 // pred_region
      %43 = dma.done [#allocation7], 1024
    $region17: #{tpu_custom_call.1} parent=1 // pred_fallthru
      _
    %p45 = scmp.eq.s32.totalorder 0, 0
    // Predicated region
    $region18: #{tpu_custom_call.1} parent=1 // pred_check
      %p46 = pneg %p45
    $region19: #{tpu_custom_call.1} parent=1 // pred_check_branch
      %48 = sbr.rel (%p46) target = $region21
    $region20: #{tpu_custom_call.1} parent=1 // pred_region
      %49 = vst [vmem:[#allocation2] sm:$0xff] 0.0
      %vm50 = vcmask 523264
      %51 = vst.msk [vmem:[#allocation2 + $0x8] sm:$0xff] %vm50, 0.0
      %52 = vst [vmem:[#allocation2 + $0x10] sm:$0xff] 0.0
      %53 = vst.msk [vmem:[#allocation2 + $0x18] sm:$0xff] %vm50, 0.0
    $region21: #{tpu_custom_call.1} parent=1 // pred_fallthru
      _
    %v54 = vld [vmem:[#allocation2] sm:$0xff]
    %v55 = vld [vmem:[#allocation2 + $0x8] sm:$0xff]
    %v56 = vld [vmem:[#allocation2 + $0x10] sm:$0xff]
    %v57 = vld [vmem:[#allocation2 + $0x18] sm:$0xff]
    %v58 = vld [vmem:[#allocation3] sm:$0xff]
    %v59 = vld [vmem:[#allocation3 + $0x8] sm:$0xff]
    %v60 = vpack.c.bf16 %v59, %v58
    %v61 = vld [vmem:[#allocation6] sm:$0xff]
    %v62 = vld [vmem:[#allocation6 + $0x8] sm:$0xff]
    %v63 = vld [vmem:[#allocation6 + $0x10] sm:$0xff]
    %v64 = vld [vmem:[#allocation6 + $0x18] sm:$0xff]
    %v65 = vld [vmem:[#allocation6 + $0x20] sm:$0xff]
    %v66 = vld [vmem:[#allocation6 + $0x28] sm:$0xff]
    %v67 = vld [vmem:[#allocation6 + $0x30] sm:$0xff]
    %v68 = vld [vmem:[#allocation6 + $0x38] sm:$0xff]
    %v69 = vpack.c.bf16 %v63, %v61
    %v70 = vpack.c.bf16 %v64, %v62
    %v71 = vpack.c.bf16 %v67, %v65
    %v72 = vpack.c.bf16 %v68, %v66
    %vm73 = vcmask 261120
    %v75 = vsel %vm73, %v60, 0
    %77 = vmatpush.bf16.msra.mxu0 0
    %78 = vmatpush.bf16.msra.mxu0 0
    %79 = vmatpush.bf16.msra.mxu0 0
    %80 = vmatpush.bf16.msra.mxu0 0
    %81 = vmatpush.bf16.msra.mxu0 0
    %82 = vmatpush.bf16.msra.mxu0 0
    %83 = vmatpush.bf16.msra.mxu0 %v71
    %84 = vmatpush.bf16.msra.mxu0 %v69
    %85 = vmatmul.bf16.gmra.mxu0 %v75
    %v86 = vpop.f32.mrf.mxu0
    %v87 = vadd.f32 0.0, %v86
    %v88 = vpop.f32.mrf.mxu0
    %v89 = vadd.f32 0.0, %v88
    %90 = vdwg.mxu0
    %91 = vmatpush.bf16.msra.mxu0 0
    %92 = vmatpush.bf16.msra.mxu0 0
    %93 = vmatpush.bf16.msra.mxu0 0
    %94 = vmatpush.bf16.msra.mxu0 0
    %95 = vmatpush.bf16.msra.mxu0 0
    %96 = vmatpush.bf16.msra.mxu0 0
    %97 = vmatpush.bf16.msra.mxu0 %v72
    %98 = vmatpush.bf16.msra.mxu0 %v70
    %99 = vmatmul.bf16.gmra.mxu0 %v75
    %v100 = vpop.f32.mrf.mxu0
    %v101 = vadd.f32 0.0, %v100
    %v102 = vpop.f32.mrf.mxu0
    %v103 = vadd.f32 0.0, %v102
    %104 = vdwg.mxu0
    %v105 = vadd.f32 %v54, %v87
    %v106 = vadd.f32 %v55, %v101
    %v107 = vadd.f32 %v56, %v89
    %v108 = vadd.f32 %v57, %v103
    %109 = vst [vmem:[#allocation2] sm:$0xff] %v105
    %vm110 = vcmask 523264
    %111 = vst.msk [vmem:[#allocation2 + $0x8] sm:$0xff] %vm110, %v106
    %112 = vst [vmem:[#allocation2 + $0x10] sm:$0xff] %v107
    %113 = vst.msk [vmem:[#allocation2 + $0x18] sm:$0xff] %vm110, %v108
    // Predicated region
    $region22: #{tpu_custom_call.1} parent=1 // pred_check
      %p114 = pneg %p45
    $region23: #{tpu_custom_call.1} parent=1 // pred_check_branch
      %116 = sbr.rel (%p114) target = $region25
    $region24: #{tpu_custom_call.1} parent=1 // pred_region
      %v117 = vld [vmem:[#allocation2] sm:$0xff]
      %v118 = vld [vmem:[#allocation2 + $0x8] sm:$0xff]
      %v119 = vld [vmem:[#allocation2 + $0x10] sm:$0xff]
      %v120 = vld [vmem:[#allocation2 + $0x18] sm:$0xff]
      %121 = vst [vmem:[#allocation8] sm:$0xff] %v117
      %122 = vst.msk [vmem:[#allocation8 + $0x8] sm:$0xff] %vm110, %v118
      %123 = vst [vmem:[#allocation8 + $0x10] sm:$0xff] %v119
      %124 = vst.msk [vmem:[#allocation8 + $0x18] sm:$0xff] %vm110, %v120
    $region25: #{tpu_custom_call.1} parent=1 // pred_fallthru
      _
    // Predicated region
    $region26: #{tpu_custom_call.1} parent=1 // pred_check
      _
    $region27: #{tpu_custom_call.1} parent=1 // pred_check_branch
      %126 = sbr.rel (0) target = $region29
    $region28: #{tpu_custom_call.1} parent=1 // pred_region
      %128 = vsyncadd [#allocation5], 0
      %s129 = sshll.u32 [#allocation8], 4
      %s130 = int_to_ptr.vmem [resolvable:$true] %s129
      %s131 = sshll.u32 %s2, 4
      %s132 = int_to_ptr.hbm [resolvable:$true] %s131
      %137 = dma.vmem_to_hbm [thread:$0]  %s130, 512, %s132, [#allocation5], 256, 256, 16
    $region29: #{tpu_custom_call.1} parent=1 // pred_fallthru
      _
    // Predicated region
    $region30: #{tpu_custom_call.1} parent=1 // pred_check
      _
    $region31: #{tpu_custom_call.1} parent=1 // pred_check_branch
      %139 = sbr.rel (0) target = $region33
    $region32: #{tpu_custom_call.1} parent=1 // pred_region
      %141 = dma.done [#allocation5], 512
    $region33: #{tpu_custom_call.1} parent=1 // pred_fallthru
      _
    %142 = vsyncpa [#allocation4], 1
    %143 = vsyncpa [#allocation7], 1
    %144 = vsyncpa [#allocation5], 1

</llo_original>
